<compile_context>
chip_gen: v5e
topology: v5e:2x2
jax: 0.10.0
libtpu: 0.0.40
codegen_flags: <defaults>
</compile_context>

<pallas_src>
import numpy as np
import jax
import jax.numpy as jnp
from jax.experimental import pallas as pl
from jax.experimental.pallas import tpu as pltpu


# ----------------------------------------------------------------------------
# Host-side: 1-D interpolation matrices (shape-only params)
# ----------------------------------------------------------------------------
def _cubic_kernel(x: float, a: float = -0.75) -> float:
    # PyTorch bicubic convolution kernel (A = -0.75)
    x = abs(x)
    if x <= 1.0:
        return (a + 2.0) * x ** 3 - (a + 3.0) * x ** 2 + 1.0
    elif x < 2.0:
        return a * (x ** 3 - 5.0 * x ** 2 + 8.0 * x - 4.0)
    return 0.0


def _source_index(o, in_size, out_size, align_corners):
    if align_corners:
        if out_size <= 1:
            return 0.0
        return o * (in_size - 1) / (out_size - 1)
    # half-pixel centers (PyTorch align_corners=False)
    return (o + 0.5) * in_size / out_size - 0.5


def build_interp_matrix(in_size, out_size, mode, align_corners):
    """(out_size, in_size) matrix M s.t. y = M @ x performs a 1-D resize."""
    M = np.zeros((out_size, in_size), dtype=np.float32)
    for o in range(out_size):
        src = _source_index(o, in_size, out_size, align_corners)
        if mode == "bicubic":
            i0 = int(np.floor(src))
            t = src - i0
            for k in range(-1, 3):
                w = _cubic_kernel(t - k)
                j = min(max(i0 + k, 0), in_size - 1)
                M[o, j] += w
        elif mode == "bilinear":
            s = src if align_corners else max(src, 0.0)
            i0 = min(max(int(np.floor(s)), 0), in_size - 1)
            i1 = min(i0 + 1, in_size - 1)
            t = s - i0
            M[o, i0] += 1.0 - t
            M[o, i1] += t
        else:
            # TODO(synk): 'nearest' / 'area' modes not implemented here.
            raise NotImplementedError(f"mode {mode} not supported")
    # TODO(synk): for very large in_size, exploit the 4-tap band structure
    # (tile the contraction dim, skip zero blocks) instead of the dense form.
    return jnp.asarray(M)


# ----------------------------------------------------------------------------
# Kernels
# ----------------------------------------------------------------------------
def _resize_kernel_nofold(x_ref, mh_ref, mwT_ref, o_ref):
    """Wo >= 128: output written directly as (B, Ho, Wo), lane-dense rows."""
    B, H, W = x_ref.shape
    Wo = mwT_ref.shape[1]
    cdt = mh_ref.dtype
    # Width resize for all B planes at once (one wide MXU matmul, f32 acc).
    tmp = jnp.dot(x_ref[...].reshape(B * H, W), mwT_ref[...],
                  preferred_element_type=jnp.float32)            # (B*H, Wo)
    tmp = tmp.astype(cdt).reshape(B, H, Wo)
    # Height resize per plane; stores land directly in (B, Ho, Wo) layout —
    # no fold, no wrapper transpose. B is small and static (unrolled).
    for b in range(B):
        o_ref[b] = jnp.dot(mh_ref[...], tmp[b],
                           preferred_element_type=jnp.float32).astype(o_ref.dtype)


def _resize_kernel_fold(x_ref, mh_ref, mwT_ref, o_ref):
    """Wo < 128: fold the plane batch into lanes -> lane-dense (Ho, B*Wo)."""
    B, H, W = x_ref.shape
    Wo = mwT_ref.shape[1]
    cdt = mh_ref.dtype
    tmp = jnp.dot(x_ref[...].reshape(B * H, W), mwT_ref[...],
                  preferred_element_type=jnp.float32)            # (B*H, Wo)
    tmp = tmp.astype(cdt).reshape(B, H, Wo)
    if B == 1:
        folded = tmp[0]                                          # (H, Wo)
    else:
        # Value-level fold: lane concatenate (XLU/copy work), instead of B
        # masked partial-lane VMEM stores + a full slab reload.
        folded = jnp.concatenate([tmp[b] for b in range(B)], axis=-1)  # (H, B*Wo)
    out = jnp.dot(mh_ref[...], folded, preferred_element_type=jnp.float32)
    o_ref[0] = out.astype(o_ref.dtype)


# ----------------------------------------------------------------------------
# Wrapper-side plumbing
# ----------------------------------------------------------------------------
def _tpu_vmem_capacity():
    try:
        info = pltpu.get_tpu_info()
        cap = int(getattr(info, "vmem_capacity_bytes", 0))
        if cap > 0:
            return cap
    except Exception:
        pass
    return 64 * 1024 * 1024        # safe lower bound across v5e/v6e/v7x


def _num_tensorcores_per_chip():
    try:
        kind = jax.devices()[0].device_kind.lower()
    except Exception:
        return 1
    # 1 TensorCore per chip on the "e"/lite parts; 2 on megacore / v7x parts.
    one_tc = ("v5e", "v5 lite", "v5lite", "v6e", "v6 lite", "v6lite")
    return 1 if any(t in kind for t in one_tc) else 2


def _choose_plane_batch(num_planes, H, Wo, step_bytes, budget, min_steps,
                        max_planes_per_step=32):
    """Pick how many (n, c) planes to process per grid step.

    Prefers exact divisors of num_planes (avoids a jnp.pad HBM copy of the
    input); pads only when that is needed to reach a lane-dense (>=128 lane)
    output slab in the fold path.
    """
    max_b = 1
    for b in range(1, num_planes + 1):
        if b > max_planes_per_step or b * H > 4096 or step_bytes(b) > budget:
            break
        max_b = b
    prefer_b = min(max_b, max(1, pl.cdiv(128, Wo)))   # lane-dense minimum

    divisors = [b for b in range(1, max_b + 1)
                if num_planes % b == 0 and pl.cdiv(num_planes, b) >= min_steps]
    b_div = max(divisors) if divisors else 1
    if b_div >= prefer_b or b_div == max_b:
        return b_div, num_planes // b_div, num_planes

    padded_cands = [b for b in range(prefer_b, max_b + 1)
                    if pl.cdiv(num_planes, b) >= min_steps]
    if not padded_cands:
        return b_div, num_planes // b_div, num_planes
    B = min(padded_cands)
    G = pl.cdiv(num_planes, B)
    return B, G, G * B


def _pallas_resize(xf, Mh, MwT, B, G, out_dtype, nofold, vmem_limit,
                   single_buffer_consts=True):
    P, H, W = xf.shape                      # P = G * B
    Ho = Mh.shape[0]
    Wo = MwT.shape[1]

    flops = 2 * P * (H * W * Wo + Ho * H * Wo)
    bytes_accessed = (P * H * W * xf.dtype.itemsize
                      + P * Ho * Wo * np.dtype(out_dtype).itemsize
                      + (Ho * H + W * Wo) * Mh.dtype.itemsize)
    cost = pl.CostEstimate(flops=flops, transcendentals=0,
                           bytes_accessed=bytes_accessed)

    if nofold:
        kernel = _resize_kernel_nofold
        out_shape = jax.ShapeDtypeStruct((P, Ho, Wo), out_dtype)
        out_specs = pl.BlockSpec((B, Ho, Wo), lambda i: (i, 0, 0))
    else:
        kernel = _resize_kernel_fold
        out_shape = jax.ShapeDtypeStruct((G, Ho, B * Wo), out_dtype)
        out_specs = pl.BlockSpec((1, Ho, B * Wo), lambda i: (i, 0, 0))

    try:
        const_kwargs = (
            {"pipeline_mode": pl.Buffered(1)} if single_buffer_consts else {})
        return pl.pallas_call(
            kernel,
            out_shape=out_shape,
            grid=(G,),
            in_specs=[
                pl.BlockSpec((B, H, W), lambda i: (i, 0, 0)),
                pl.BlockSpec((Ho, H), lambda i: (0, 0), **const_kwargs),
                pl.BlockSpec((W, Wo), lambda i: (0, 0), **const_kwargs),
            ],
            out_specs=out_specs,
            compiler_params=pltpu.CompilerParams(
                dimension_semantics=("parallel",),
                vmem_limit_bytes=int(vmem_limit)),
            cost_estimate=cost,
        )(xf, Mh, MwT)
    except (TypeError, ValueError, NotImplementedError,
            pltpu.LoweringException):
        # Narrow fallback: only for Buffered(1) not being accepted by this jax
        # version; any unrelated error re-raises identically from the retry.
        if single_buffer_consts:
            return _pallas_resize(xf, Mh, MwT, B, G, out_dtype, nofold,
                                  vmem_limit, single_buffer_consts=False)
        raise


def _val2list(x, repeat=2):
    if isinstance(x, (list, tuple)):
        return list(x)
    return [x] * repeat


def upsample_layer_forward(x, mode="bicubic", size=None, factor=2,
                           align_corners=False):
    """Pallas equivalent of UpSampleLayer.forward. x is NCHW."""
    N, C, H, W = x.shape
    size = _val2list(size, 2) if size is not None else None
    factor = None if size is not None else factor

    # identity pass-through cases from the PyTorch module
    if (size is not None and (H, W) == tuple(size)) or factor == 1:
        return x

    if size is not None:
        Ho, Wo = int(size[0]), int(size[1])
    else:
        Ho, Wo = int(H * factor), int(W * factor)

    # Interp matrices in the activation's compute dtype so both matmuls take
    # the fast MXU path (bf16 stays bf16); accumulation stays f32.
    cdt = jnp.bfloat16 if x.dtype == jnp.bfloat16 else jnp.float32
    Mh = build_interp_matrix(H, Ho, mode, align_corners).astype(cdt)      # (Ho, H)
    MwT = build_interp_matrix(W, Wo, mode, align_corners).T.astype(cdt)   # (W, Wo)

    num_planes = N * C
    itemsize = np.dtype(x.dtype).itemsize
    csize = np.dtype(cdt).itemsize
    nofold = Wo >= 128            # per-plane output rows already lane-dense

    vmem_cap = _tpu_vmem_capacity()
    n_cores = _num_tensorcores_per_chip()
    vmem_limit = int(max(32 << 20, min(vmem_cap * 3 // 4, 112 << 20)))
    budget = int(vmem_limit * 0.85)
    # ">=2 grid steps" only matters when there are 2 TensorCores to shard over
    min_steps = 2 if (n_cores >= 2 and num_planes >= 2) else 1

    const_bytes = 2 * (Ho * H + W * Wo) * csize   # worst case: double-buffered

    def step_bytes(b):
        return (2 * b * H * W * itemsize        # input block (double buffered)
                + 2 * b * Ho * Wo * itemsize    # output block (double buffered)
                + b * H * Wo * (4 + csize)      # width-matmul acc + cast copy
                + b * Ho * Wo * 4               # height-matmul f32 accumulator
                + const_bytes)                  # interp matrices (fixed w.r.t. b)

    # TODO(synk): planes so large that even B=1 exceeds the budget (e.g. a
    # 2k->4k f32 resize on v7x's 64 MiB VMEM) additionally need Ho/Wo tiling
    # (slice Mh rows / MwT columns via the index_map) or the banded 4-tap form.
    B, G, padded = _choose_plane_batch(num_planes, H, Wo, step_bytes, budget,
                                       min_steps)

    xf = x.reshape(num_planes, H, W)
    if padded != num_planes:
        xf = jnp.pad(xf, ((0, padded - num_planes), (0, 0), (0, 0)))

    out = _pallas_resize(xf, Mh, MwT, B, G, x.dtype, nofold, vmem_limit)

    if nofold:
        out = out[:num_planes]                                  # (planes, Ho, Wo)
    else:
        # un-interleave the lane-dense slabs (G, Ho, B*Wo) -> (planes, Ho, Wo)
        out = out.reshape(G, Ho, B, Wo).transpose(0, 2, 1, 3)
        out = out.reshape(padded, Ho, Wo)[:num_planes]
    return out.reshape(N, C, Ho, Wo)


if __name__ == "__main__":
    key = jax.random.PRNGKey(0)
    x = jax.random.normal(key, (2, 4, 16, 16), dtype=jnp.float32)

    # default path: bicubic 2x, align_corners=False (fold path, Wo=32 < 128)
    y = jax.block_until_ready(
        upsample_layer_forward(x, mode="bicubic", size=None, factor=2,
                               align_corners=False))
    assert y.shape == (2, 4, 32, 32), y.shape
    assert y.dtype == x.dtype
    assert bool(jnp.all(jnp.isfinite(y)))

    Mh = build_interp_matrix(16, 32, "bicubic", False)
    MwT = build_interp_matrix(16, 32, "bicubic", False).T
    ref = jnp.einsum("ncow,wq->ncoq", jnp.einsum("oh,nchw->ncow", Mh, x), MwT)
    err = float(jnp.max(jnp.abs(y - ref)))
    assert err < 1e-1, f"bicubic 2x: max abs err {err}"

    # identity pass-through (factor=1)
    y_id = upsample_layer_forward(x, factor=1)
    assert y_id.shape == x.shape

    # non-power-of-two plane count + explicit size + bilinear (fold path)
    x2 = jax.random.normal(jax.random.PRNGKey(1), (2, 3, 16, 16), jnp.float32)
    y2 = jax.block_until_ready(
        upsample_layer_forward(x2, mode="bilinear", size=(24, 40)))
    assert y2.shape == (2, 3, 24, 40), y2.shape
    Mh2 = build_interp_matrix(16, 24, "bilinear", False)
    MwT2 = build_interp_matrix(16, 40, "bilinear", False).T
    ref2 = jnp.einsum("ncow,wq->ncoq",
                      jnp.einsum("oh,nchw->ncow", Mh2, x2), MwT2)
    err2 = float(jnp.max(jnp.abs(y2 - ref2)))
    assert err2 < 1e-1, f"bilinear/size: max abs err {err2}"

    # wide output (Wo >= 128): no-fold path, output written directly as
    # (planes, Ho, Wo) with no wrapper-side transpose
    x3 = jax.random.normal(jax.random.PRNGKey(2), (1, 2, 8, 64), jnp.float32)
    y3 = jax.block_until_ready(upsample_layer_forward(x3, factor=2))
    assert y3.shape == (1, 2, 16, 128), y3.shape
    Mh3 = build_interp_matrix(8, 16, "bicubic", False)
    MwT3 = build_interp_matrix(64, 128, "bicubic", False).T
    ref3 = jnp.einsum("ncow,wq->ncoq",
                      jnp.einsum("oh,nchw->ncow", Mh3, x3), MwT3)
    err3 = float(jnp.max(jnp.abs(y3 - ref3)))
    assert err3 < 1e-1, f"nofold path: max abs err {err3}"

    # bf16 activations run the bf16 MXU path end-to-end
    xb = x.astype(jnp.bfloat16)
    yb = jax.block_until_ready(upsample_layer_forward(xb, factor=2))
    assert yb.shape == (2, 4, 32, 32) and yb.dtype == jnp.bfloat16
    errb = float(jnp.max(jnp.abs(yb.astype(jnp.float32) - ref)))
    assert errb < 5e-1, f"bf16: max abs err {errb}"

    print("KERNEL_OK")
</pallas_src>

<mosaic_0001>
module attributes {stable_mosaic.version = 11 : i64} {
  func.func @_resize_kernel_fold(%arg0: i32, %arg1: memref<4x16x16xf32, #tpu.memory_space<vmem>>, %arg2: memref<32x16xf32, #tpu.memory_space<vmem>>, %arg3: memref<16x32xf32, #tpu.memory_space<vmem>>, %arg4: memref<1x32x128xf32, #tpu.memory_space<vmem>>) attributes {dimension_semantics = [#tpu.dimension_semantics<parallel>], iteration_bounds = array<i64: 2>, scalar_prefetch = 0 : i64, scratch_operands = 0 : i64, tpu.core_type = #tpu.core_type<tc>, window_params = [{transform_indices = @transform_0, window_bounds = array<i64: 4, 16, 16>}, {pipeline_mode = #tpu.pipeline_mode<synchronous>, transform_indices = @transform_1, window_bounds = array<i64: 32, 16>}, {pipeline_mode = #tpu.pipeline_mode<synchronous>, transform_indices = @transform_2, window_bounds = array<i64: 16, 32>}, {transform_indices = @transform_3, window_bounds = array<i64: 1, 32, 128>}]} {
    %c0 = arith.constant 0 : index
    %c0_0 = arith.constant 0 : index
    %c0_1 = arith.constant 0 : index
    %0 = vector.load %arg1[%c0, %c0_0, %c0_1] : memref<4x16x16xf32, #tpu.memory_space<vmem>>, vector<4x16x16xf32>
    %1 = vector.shape_cast %0 : vector<4x16x16xf32> to vector<64x16xf32>
    %c0_2 = arith.constant 0 : index
    %c0_3 = arith.constant 0 : index
    %2 = vector.load %arg3[%c0_2, %c0_3] : memref<16x32xf32, #tpu.memory_space<vmem>>, vector<16x32xf32>
    %cst = arith.constant dense<0.000000e+00> : vector<64x32xf32>
    %3 = tpu.matmul %1, %2, %cst {dimension_numbers = #tpu.dot_dimension_numbers<[1], [0], [0], [1], [0, 0, 1, 1], [], []>} : vector<64x16xf32>, vector<16x32xf32>, vector<64x32xf32> -> vector<64x32xf32>
    %4 = vector.shape_cast %3 : vector<64x32xf32> to vector<4x16x32xf32>
    %5 = vector.extract_strided_slice %4 {offsets = [0, 0, 0], sizes = [1, 16, 32], strides = [1, 1, 1]} : vector<4x16x32xf32> to vector<1x16x32xf32>
    %6 = vector.shape_cast %5 : vector<1x16x32xf32> to vector<16x32xf32>
    %7 = vector.extract_strided_slice %4 {offsets = [1, 0, 0], sizes = [1, 16, 32], strides = [1, 1, 1]} : vector<4x16x32xf32> to vector<1x16x32xf32>
    %8 = vector.shape_cast %7 : vector<1x16x32xf32> to vector<16x32xf32>
    %9 = vector.extract_strided_slice %4 {offsets = [2, 0, 0], sizes = [1, 16, 32], strides = [1, 1, 1]} : vector<4x16x32xf32> to vector<1x16x32xf32>
    %10 = vector.shape_cast %9 : vector<1x16x32xf32> to vector<16x32xf32>
    %11 = vector.extract_strided_slice %4 {offsets = [3, 0, 0], sizes = [1, 16, 32], strides = [1, 1, 1]} : vector<4x16x32xf32> to vector<1x16x32xf32>
    %12 = vector.shape_cast %11 : vector<1x16x32xf32> to vector<16x32xf32>
    %13 = tpu.concatenate %6, %8, %10, %12 in 1 : vector<16x32xf32>, vector<16x32xf32>, vector<16x32xf32>, vector<16x32xf32> -> vector<16x128xf32>
    %c0_4 = arith.constant 0 : index
    %c0_5 = arith.constant 0 : index
    %14 = vector.load %arg2[%c0_4, %c0_5] : memref<32x16xf32, #tpu.memory_space<vmem>>, vector<32x16xf32>
    %cst_6 = arith.constant dense<0.000000e+00> : vector<32x128xf32>
    %15 = tpu.matmul %14, %13, %cst_6 {dimension_numbers = #tpu.dot_dimension_numbers<[1], [0], [0], [1], [0, 0, 1, 1], [], []>} : vector<32x16xf32>, vector<16x128xf32>, vector<32x128xf32> -> vector<32x128xf32>
    %c0_7 = arith.constant 0 : index
    %c0_8 = arith.constant 0 : index
    %c0_9 = arith.constant 0 : index
    %16 = vector.load %arg4[%c0_7, %c0_8, %c0_9] : memref<1x32x128xf32, #tpu.memory_space<vmem>>, vector<1x32x128xf32>
    %17 = vector.shape_cast %16 : vector<1x32x128xf32> to vector<32x128xf32>
    %18 = vector.shape_cast %15 : vector<32x128xf32> to vector<1x32x128xf32>
    tpu.vector_store %arg4[%c0_7, %c0_8, %c0_9], %18 {strides = array<i32>} : memref<1x32x128xf32, #tpu.memory_space<vmem>>, vector<1x32x128xf32>,
    return
  }
  func.func @transform_0(%arg0: i32) -> (i32, i32, i32) {
    %c0_i32 = arith.constant 0 : i32
    %c0_i32_0 = arith.constant 0 : i32
    %c0_i32_1 = arith.constant 0 : i32
    return %arg0, %c0_i32, %c0_i32_0 : i32, i32, i32
  }
  func.func @transform_1(%arg0: i32) -> (i32, i32) {
    %c0_i32 = arith.constant 0 : i32
    %c0_i32_0 = arith.constant 0 : i32
    %c0_i32_1 = arith.constant 0 : i32
    return %c0_i32, %c0_i32_0 : i32, i32
  }
  func.func @transform_2(%arg0: i32) -> (i32, i32) {
    %c0_i32 = arith.constant 0 : i32
    %c0_i32_0 = arith.constant 0 : i32
    %c0_i32_1 = arith.constant 0 : i32
    return %c0_i32, %c0_i32_0 : i32, i32
  }
  func.func @transform_3(%arg0: i32) -> (i32, i32, i32) {
    %c0_i32 = arith.constant 0 : i32
    %c0_i32_0 = arith.constant 0 : i32
    %c0_i32_1 = arith.constant 0 : i32
    return %arg0, %c0_i32, %c0_i32_0 : i32, i32, i32
  }
}

</mosaic_0001>

<llo_original>
// kernel: tpu_custom_call.1
$region0: #{tpu_custom_call.1}
  #allocation0 [shape = 'u32[]', space=smem, size = 0x4, offset = 0x4, fixed_abs, tag = 'smem constant byte address 0x4 - core index']
  #allocation1 [shape = 'u32[72,128]{1,0:T(1,128)}', space=vmem, size = 0x9000, scoped, tag = 'internal scratch']
  %s0 = inlined_call_operand.hbm [shape: f32[8,16,16], index: 0, kind: input, shape index: {}]
  %s1 = inlined_call_operand.vmem [shape: f32[32,16], index: 1, kind: input, shape index: {}]
  %s2 = inlined_call_operand.vmem [shape: f32[16,32], index: 2, kind: input, shape index: {}]
  %s3 = inlined_call_operand.hbm [shape: f32[2,32,128], index: 3, kind: output, shape index: {}]
  %s4 = sld [smem:[#allocation0]]
  $region49: #{tpu_custom_call.1} parent=0
    _
  %s6 = ssub.s32 1, %s4
  %s7 = scalar_select 0, %s6, %s4
  $region1: #{tpu_custom_call.1} parent=0
    #allocation2 [shape = 'u8[65536]{0}', space=vmem, size = 0x10000, scoped, tag = 'input window, operand 0']
    #allocation3 [shape = 's32[2]{0}', space=sflag, size = 0x8, scoped, tag = 'scoped memory for tpu_custom_call.1']
    #allocation4 [shape = 's32[2]{0}', space=sflag, size = 0x8, scoped, tag = 'scoped memory for tpu_custom_call.1']
    #allocation5 [shape = 'u8[32768]{0}', space=vmem, size = 0x8000, scoped, tag = 'output window, operand 0']
    %8 = vsyncpa [#allocation3], 0
    %s9 = scalar_lea.sflag [#allocation3], 1
    %10 = vsyncpa %s9, 0
    %11 = vsyncpa [#allocation4], 0
    %s12 = scalar_lea.sflag [#allocation4], 1
    %13 = vsyncpa %s12, 0
    loop: start=0, step=1, limit=4
    $region2: #{tpu_custom_call.1} parent=1 // loop_pre_header
      _
    $region3: #{tpu_custom_call.1} parent=1 // loop_header
      %s15 = sphi 0, %s19
      %p16 = scmp.ge.s32.totalorder %s15, 4
      %s25 = sphi 0, %s27
      %s28 = sphi 0, %s25
      %s29 = sphi 0, %s28
      %s45 = sphi 0, %s29
      %s49 = sphi 0, %s49
      %s51 = sphi 0, %s49
      %s52 = sphi 0, %s51
      %s66 = sphi 0, %s52
      %s70 = sphi 0, %s70
      %s72 = sphi 0, %s70
      %s73 = sphi 0, %s72
      %s87 = sphi 0, %s73
      %s93 = sphi 0, %s95
      %s96 = sphi 0, %s93
      %s97 = sphi 0, %s96
      %s113 = sphi 0, %s97
    $region4: #{tpu_custom_call.1} parent=1 // loop_header_branch
      %18 = sbr.rel (%p16) target = $region8
    $region5: #{tpu_custom_call.1} parent=1 // loop_body
      %s20 = ssub.s32 %s15, 1
      %s21 = ssub.s32 %s15, 2
      %s22 = sadd.s32 %s15, 1
      %s23 = ssub.s32 %s15, %s22
      %p24 = scmp.eq.s32.totalorder %s23, 0
      %s26 = sadd.s32 %s25, 1
      %s27 = scalar_select %p24, %s25, %s26
      %p30 = pneg %p24
      %p31 = scmp.eq.s32.totalorder %s15, 1
      %p32 = por %p30, %p31
      %p33 = scmp.ne.s32.totalorder %s25, %s28
      %p34 = scmp.eq.s32.totalorder %s15, 0
      %p35 = por %p33, %p34
      %p36 = scmp.ne.s32.totalorder %s25, %s28
      %p37 = scmp.eq.s32.totalorder %s20, 1
      %p38 = por %p36, %p37
      %p39 = scmp.ne.s32.totalorder %s28, %s29
      %p40 = scmp.eq.s32.totalorder %s20, 0
      %p41 = por %p39, %p40
      %p42 = scmp.ne.s32.totalorder %s28, %s29
      %p43 = scmp.eq.s32.totalorder %s21, 1
      %p44 = por %p42, %p43
      %p46 = scmp.ne.s32.totalorder %s29, %s45
      %p47 = scmp.eq.s32.totalorder %s21, 0
      %p48 = por %p46, %p47
      %s50 = sadd.s32 %s49, 1
      %p53 = scmp.eq.s32.totalorder %s15, 1
      %p54 = scmp.ne.s32.totalorder %s49, %s51
      %p55 = scmp.eq.s32.totalorder %s15, 0
      %p56 = por %p54, %p55
      %p57 = scmp.ne.s32.totalorder %s49, %s51
      %p58 = scmp.eq.s32.totalorder %s20, 1
      %p59 = por %p57, %p58
      %p60 = scmp.ne.s32.totalorder %s51, %s52
      %p61 = scmp.eq.s32.totalorder %s20, 0
      %p62 = por %p60, %p61
      %p63 = scmp.ne.s32.totalorder %s51, %s52
      %p64 = scmp.eq.s32.totalorder %s21, 1
      %p65 = por %p63, %p64
      %p67 = scmp.ne.s32.totalorder %s52, %s66
      %p68 = scmp.eq.s32.totalorder %s21, 0
      %p69 = por %p67, %p68
      %s71 = sadd.s32 %s70, 1
      %p74 = scmp.eq.s32.totalorder %s15, 1
      %p75 = scmp.ne.s32.totalorder %s70, %s72
      %p76 = scmp.eq.s32.totalorder %s15, 0
      %p77 = por %p75, %p76
      %p78 = scmp.ne.s32.totalorder %s70, %s72
      %p79 = scmp.eq.s32.totalorder %s20, 1
      %p80 = por %p78, %p79
      %p81 = scmp.ne.s32.totalorder %s72, %s73
      %p82 = scmp.eq.s32.totalorder %s20, 0
      %p83 = por %p81, %p82
      %p84 = scmp.ne.s32.totalorder %s72, %s73
      %p85 = scmp.eq.s32.totalorder %s21, 1
      %p86 = por %p84, %p85
      %p88 = scmp.ne.s32.totalorder %s73, %s87
      %p89 = scmp.eq.s32.totalorder %s21, 0
      %p90 = por %p88, %p89
      %s91 = ssub.s32 %s15, %s22
      %p92 = scmp.eq.s32.totalorder %s91, 0
      %s94 = sadd.s32 %s93, 1
      %s95 = scalar_select %p92, %s93, %s94
      %p98 = pneg %p92
      %p99 = scmp.eq.s32.totalorder %s15, 1
      %p100 = por %p98, %p99
      %p101 = scmp.ne.s32.totalorder %s93, %s96
      %p102 = scmp.eq.s32.totalorder %s15, 0
      %p103 = por %p101, %p102
      %p104 = scmp.ne.s32.totalorder %s93, %s96
      %p105 = scmp.eq.s32.totalorder %s20, 1
      %p106 = por %p104, %p105
      %p107 = scmp.ne.s32.totalorder %s96, %s97
      %p108 = scmp.eq.s32.totalorder %s20, 0
      %p109 = por %p107, %p108
      %p110 = scmp.ne.s32.totalorder %s96, %s97
      %p111 = scmp.eq.s32.totalorder %s21, 1
      %p112 = por %p110, %p111
      %p114 = scmp.ne.s32.totalorder %s97, %s113
      %p115 = scmp.eq.s32.totalorder %s21, 0
      %p116 = por %p114, %p115
      %p117 = scmp.le.s32.totalorder 1, %s15
      %p118 = scmp.lt.s32.totalorder %s15, 3
      %p119 = pnand %p117, %p118
      %p120 = pneg %p119
      // Predicated region
      $region9: #{tpu_custom_call.1} parent=5 // pred_check
        _
      $region10: #{tpu_custom_call.1} parent=5 // pred_check_branch
        %122 = sbr.rel (%p119) target = $region12
      $region11: #{tpu_custom_call.1} parent=5 // pred_region
        %s123 = ssub.s32 %s15, 1
        // Predicated region
        $region13: #{tpu_custom_call.1} parent=11 // pred_check
          %p124 = pneg %p62
        $region14: #{tpu_custom_call.1} parent=11 // pred_check_branch
          %126 = sbr.rel (%p124) target = $region16
        $region15: #{tpu_custom_call.1} parent=11 // pred_region
          _
        $region16: #{tpu_custom_call.1} parent=11 // pred_fallthru
          _
        // Predicated region
        $region17: #{tpu_custom_call.1} parent=11 // pred_check
          %p127 = pneg %p83
        $region18: #{tpu_custom_call.1} parent=11 // pred_check_branch
          %129 = sbr.rel (%p127) target = $region20
        $region19: #{tpu_custom_call.1} parent=11 // pred_region
          _
        $region20: #{tpu_custom_call.1} parent=11 // pred_fallthru
          _
      $region12: #{tpu_custom_call.1} parent=5 // pred_fallthru
        _
      %p130 = scmp.lt.s32.totalorder %s15, 2
      // Predicated region
      $region21: #{tpu_custom_call.1} parent=5 // pred_check
        %p131 = pneg %p130
      $region22: #{tpu_custom_call.1} parent=5 // pred_check_branch
        %133 = sbr.rel (%p131) target = $region24
      $region23: #{tpu_custom_call.1} parent=5 // pred_region
        // Predicated region
        $region25: #{tpu_custom_call.1} parent=23 // pred_check
          %p134 = pneg %p35
        $region26: #{tpu_custom_call.1} parent=23 // pred_check_branch
          %136 = sbr.rel (%p134) target = $region28
        $region27: #{tpu_custom_call.1} parent=23 // pred_region
          %s137 = sand.u32 %s25, 1
          %s138 = scalar_lea.sflag [#allocation3], %s137
          %s139 = sand.u32 %s25, 1
          %s140 = smul.addr %s139, 64
          %s141 = scalar_lea.vmem [#allocation2], %s140
          %s142 = smul.u32 4, %s15
          %144 = vsyncadd %s138, 0
          %s145 = smul.addr %s142, 2
          %s146 = smul.addr %s145, 8
          %s147 = scalar_lea.hbm %s0, %s146
          %s148 = sshll.u32 %s147, 4
          %s149 = int_to_ptr.hbm [resolvable:$true] %s148
          %s150 = sshll.u32 %s141, 4
          %s151 = int_to_ptr.vmem [resolvable:$true] %s150
          %156 = dma.hbm_to_vmem [thread:$0]  %s149, 1024, %s151, %s138, 128, 128, 8
        $region28: #{tpu_custom_call.1} parent=23 // pred_fallthru
          _
      $region24: #{tpu_custom_call.1} parent=5 // pred_fallthru
        _
      %p157 = scmp.le.s32.totalorder 1, %s15
      %p158 = scmp.lt.s32.totalorder %s15, 3
      %p159 = pnand %p157, %p158
      %p160 = pneg %p159
      // Predicated region
      $region29: #{tpu_custom_call.1} parent=5 // pred_check
        _
      $region30: #{tpu_custom_call.1} parent=5 // pred_check_branch
        %162 = sbr.rel (%p159) target = $region32
      $region31: #{tpu_custom_call.1} parent=5 // pred_region
        %s163 = ssub.s32 %s15, 1
        %s164 = sand.u32 %s28, 1
        %s165 = scalar_lea.sflag [#allocation3], %s164
        %s166 = sand.u32 %s28, 1
        %s167 = smul.addr %s166, 64
        %s168 = scalar_lea.vmem [#allocation2], %s167
        // Predicated region
        $region33: #{tpu_custom_call.1} parent=31 // pred_check
          %p169 = pneg %p41
        $region34: #{tpu_custom_call.1} parent=31 // pred_check_branch
          %171 = sbr.rel (%p169) target = $region36
        $region35: #{tpu_custom_call.1} parent=31 // pred_region
          %173 = dma.done %s165, 1024
        $region36: #{tpu_custom_call.1} parent=31 // pred_fallthru
          _
        %s174 = sand.u32 %s28, 1
        %s175 = scalar_lea.sflag [#allocation3], %s174
        %s176 = sand.u32 %s28, 1
        %s177 = smul.addr %s176, 64
        %s178 = scalar_lea.vmem [#allocation2], %s177
        %p179 = pneg %p41
        %p180 = pneg %p38
        %p181 = pneg %p62
        %p182 = pneg %p59
        %p183 = pneg %p83
        %p184 = pneg %p80
        %p185 = pneg %p109
        %p186 = pneg %p106
        %s187 = sand.u32 %s96, 1
        %s188 = scalar_lea.sflag [#allocation4], %s187
        %s189 = sand.u32 %s96, 1
        %s190 = smul.addr %s189, 32
        %s191 = scalar_lea.vmem [#allocation5], %s190
        %s192 = smul.u32 4, %s20
        %v193 = vld [vmem:[%s168] sm:$0xff]
        %v194 = vld [vmem:[%s168 + $0x8] sm:$0xff]
        %v195 = vld [vmem:[%s168 + $0x10] sm:$0xff]
        %v196 = vld [vmem:[%s168 + $0x18] sm:$0xff]
        %v197 = vld [vmem:[%s168 + $0x20] sm:$0xff]
        %v198 = vld [vmem:[%s168 + $0x28] sm:$0xff]
        %v199 = vld [vmem:[%s168 + $0x30] sm:$0xff]
        %v200 = vld [vmem:[%s168 + $0x38] sm:$0xff]
        %v201 = vld [vmem:[%s2] sm:$0xff]
        %v202 = vld [vmem:[%s2 + $0x8] sm:$0xff]
        %vm203 = vcmask 130048
        %v205 = vsel %vm203, %v193, 0
        %v208 = vsel %vm203, %v194, 0
        %v211 = vsel %vm203, %v195, 0
        %v214 = vsel %vm203, %v196, 0
        %v217 = vsel %vm203, %v197, 0
        %v220 = vsel %vm203, %v198, 0
        %v223 = vsel %vm203, %v199, 0
        %v226 = vsel %vm203, %v200, 0
        %228 = vmatpush.msra.mxu0 0.0
        %229 = vmatpush.msra.mxu0 0.0
        %230 = vmatpush.msra.mxu0 0.0
        %231 = vmatpush.msra.mxu0 0.0
        %232 = vmatpush.msra.mxu0 0.0
        %233 = vmatpush.msra.mxu0 0.0
        %234 = vmatpush.msra.mxu0 0.0
        %235 = vmatpush.msra.mxu0 0.0
        %236 = vmatpush.msra.mxu0 0.0
        %237 = vmatpush.msra.mxu0 0.0
        %238 = vmatpush.msra.mxu0 0.0
        %239 = vmatpush.msra.mxu0 0.0
        %240 = vmatpush.msra.mxu0 0.0
        %241 = vmatpush.msra.mxu0 0.0
        %242 = vmatpush.msra.mxu0 %v202
        %243 = vmatpush.msra.mxu0 %v201
        %244 = vmatmul.f32.gmra.mxu0 %v205
        %v245 = vpop.f32.mrf.mxu0
        %v246 = vadd.f32 0.0, %v245
        %247 = vmatmul.f32.gmra.mxu0 %v208
        %v248 = vpop.f32.mrf.mxu0
        %v249 = vadd.f32 0.0, %v248
        %250 = vmatmul.f32.gmra.mxu0 %v211
        %v251 = vpop.f32.mrf.mxu0
        %v252 = vadd.f32 0.0, %v251
        %253 = vmatmul.f32.gmra.mxu0 %v214
        %v254 = vpop.f32.mrf.mxu0
        %v255 = vadd.f32 0.0, %v254
        %256 = vmatmul.f32.gmra.mxu0 %v217
        %v257 = vpop.f32.mrf.mxu0
        %v258 = vadd.f32 0.0, %v257
        %259 = vmatmul.f32.gmra.mxu0 %v220
        %v260 = vpop.f32.mrf.mxu0
        %v261 = vadd.f32 0.0, %v260
        %262 = vmatmul.f32.gmra.mxu0 %v223
        %v263 = vpop.f32.mrf.mxu0
        %v264 = vadd.f32 0.0, %v263
        %265 = vmatmul.f32.gmra.mxu0 %v226
        %v266 = vpop.f32.mrf.mxu0
        %v267 = vadd.f32 0.0, %v266
        %268 = vdwg.mxu0
        %271 = vrot.lane.b32.xlu0 %v252, 32
        %v272 = vpop.permute.xlu0 %271
        %273 = vrot.lane.b32.xlu0 %v255, 32
        %v274 = vpop.permute.xlu0 %273
        %279 = vrot.lane.b32.xlu0 %v258, 64
        %v280 = vpop.permute.xlu0 %279
        %281 = vrot.lane.b32.xlu0 %v261, 64
        %v282 = vpop.permute.xlu0 %281
        %287 = vrot.lane.b32.xlu0 %v264, 96
        %v288 = vpop.permute.xlu0 %287
        %289 = vrot.lane.b32.xlu0 %v267, 96
        %v290 = vpop.permute.xlu0 %289
        %vm293 = vcmask 261120
        %v294 = vsel %vm293, %v246, %v272
        %v295 = vsel %vm293, %v249, %v274
        %vm296 = vcmask 523264
        %v297 = vsel %vm296, %v294, %v280
        %v298 = vsel %vm296, %v295, %v282
        %vm299 = vcmask 785408
        %v300 = vsel %vm299, %v297, %v288
        %v301 = vsel %vm299, %v298, %v290
        %v302 = vld [vmem:[%s1] sm:$0xff]
        %v303 = vld [vmem:[%s1 + $0x8] sm:$0xff]
        %v304 = vld [vmem:[%s1 + $0x10] sm:$0xff]
        %v305 = vld [vmem:[%s1 + $0x18] sm:$0xff]
        %v307 = vsel %vm203, %v302, 0
        %v310 = vsel %vm203, %v303, 0
        %v313 = vsel %vm203, %v304, 0
        %v316 = vsel %vm203, %v305, 0
        %318 = vmatpush.msra.mxu0 0.0
        %319 = vmatpush.msra.mxu0 0.0
        %320 = vmatpush.msra.mxu0 0.0
        %321 = vmatpush.msra.mxu0 0.0
        %322 = vmatpush.msra.mxu0 0.0
        %323 = vmatpush.msra.mxu0 0.0
        %324 = vmatpush.msra.mxu0 0.0
        %325 = vmatpush.msra.mxu0 0.0
        %326 = vmatpush.msra.mxu0 0.0
        %327 = vmatpush.msra.mxu0 0.0
        %328 = vmatpush.msra.mxu0 0.0
        %329 = vmatpush.msra.mxu0 0.0
        %330 = vmatpush.msra.mxu0 0.0
        %331 = vmatpush.msra.mxu0 0.0
        %332 = vmatpush.msra.mxu0 %v301
        %333 = vmatpush.msra.mxu0 %v300
        %334 = vmatmul.f32.gmra.mxu0 %v307
        %v335 = vpop.f32.mrf.mxu0
        %v336 = vadd.f32 0.0, %v335
        %337 = vmatmul.f32.gmra.mxu0 %v310
        %v338 = vpop.f32.mrf.mxu0
        %v339 = vadd.f32 0.0, %v338
        %340 = vmatmul.f32.gmra.mxu0 %v313
        %v341 = vpop.f32.mrf.mxu0
        %v342 = vadd.f32 0.0, %v341
        %343 = vmatmul.f32.gmra.mxu0 %v316
        %v344 = vpop.f32.mrf.mxu0
        %v345 = vadd.f32 0.0, %v344
        %346 = vdwg.mxu0
        %347 = vst [vmem:[%s191] sm:$0xff] %v336
        %348 = vst [vmem:[%s191 + $0x8] sm:$0xff] %v339
        %349 = vst [vmem:[%s191 + $0x10] sm:$0xff] %v342
        %350 = vst [vmem:[%s191 + $0x18] sm:$0xff] %v345
        %s351 = sand.u32 %s96, 1
        %s352 = scalar_lea.sflag [#allocation4], %s351
        %s353 = sand.u32 %s96, 1
        %s354 = smul.addr %s353, 32
        %s355 = scalar_lea.vmem [#allocation5], %s354
        // Predicated region
        $region37: #{tpu_custom_call.1} parent=31 // pred_check
          %p356 = pneg %p106
        $region38: #{tpu_custom_call.1} parent=31 // pred_check_branch
          %358 = sbr.rel (%p356) target = $region40
        $region39: #{tpu_custom_call.1} parent=31 // pred_region
          %360 = vsyncadd %s352, 0
          %s361 = smul.addr %s20, 4
          %s362 = smul.addr %s361, 8
          %s363 = scalar_lea.hbm %s3, %s362
          %s364 = sshll.u32 %s355, 4
          %s365 = int_to_ptr.vmem [resolvable:$true] %s364
          %s366 = sshll.u32 %s363, 4
          %s367 = int_to_ptr.hbm [resolvable:$true] %s366
          %372 = dma.vmem_to_hbm [thread:$0]  %s365, 512, %s367, %s352, 128, 128, 8
        $region40: #{tpu_custom_call.1} parent=31 // pred_fallthru
          _
      $region32: #{tpu_custom_call.1} parent=5 // pred_fallthru
        _
      %p373 = scmp.le.s32.totalorder 2, %s15
      // Predicated region
      $region41: #{tpu_custom_call.1} parent=5 // pred_check
        %p374 = pneg %p373
      $region42: #{tpu_custom_call.1} parent=5 // pred_check_branch
        %376 = sbr.rel (%p374) target = $region44
      $region43: #{tpu_custom_call.1} parent=5 // pred_region
        %s377 = ssub.s32 %s15, 2
        // Predicated region
        $region45: #{tpu_custom_call.1} parent=43 // pred_check
          %p378 = pneg %p112
        $region46: #{tpu_custom_call.1} parent=43 // pred_check_branch
          %380 = sbr.rel (%p378) target = $region48
        $region47: #{tpu_custom_call.1} parent=43 // pred_region
          %s381 = sand.u32 %s97, 1
          %s382 = scalar_lea.sflag [#allocation4], %s381
          %s383 = sand.u32 %s97, 1
          %s384 = smul.addr %s383, 32
          %s385 = scalar_lea.vmem [#allocation5], %s384
          %387 = dma.done %s382, 512
        $region48: #{tpu_custom_call.1} parent=43 // pred_fallthru
          _
      $region44: #{tpu_custom_call.1} parent=5 // pred_fallthru
        _
    $region6: #{tpu_custom_call.1} parent=1 // loop_footer
      %s19 = sadd.s32 1, %s15
    $region7: #{tpu_custom_call.1} parent=1 // loop_footer_branch
      %14 = sbr.rel target = $region3
    $region8: #{tpu_custom_call.1} parent=1 // loop_exit
      _
    %388 = vsyncpa [#allocation3], 1
    %s389 = scalar_lea.sflag [#allocation3], 1
    %390 = vsyncpa %s389, 1
    %391 = vsyncpa [#allocation4], 1
    %s392 = scalar_lea.sflag [#allocation4], 1
    %393 = vsyncpa %s392, 1

</llo_original>
